<compile_context>
chip_gen: v7x
topology: tpu7x:2x2x1
jax: 0.10.0
libtpu: 0.0.40
codegen_flags: <defaults>
</compile_context>

<pallas_src>
import jax
import jax.numpy as jnp
from jax.experimental import pallas as pl
from jax.experimental.pallas import tpu as pltpu

H1, H2 = 128, 256  # hidden sizes fixed by the DQN module


def _round_up(n, m):
    return ((n + m - 1) // m) * m


def dqn_mlp_kernel(x_ref, w1_ref, b1_ref, w2_ref, b2_ref, w3_ref, b3_ref, o_ref):
    # In-kernel bf16 cast: rides slack VPU slots, x is DMA'd as f32 only once.
    x = x_ref[...].astype(jnp.bfloat16)

    h1 = jnp.dot(x, w1_ref[...], preferred_element_type=jnp.float32)
    h1 = jnp.maximum(h1 + b1_ref[...], 0.0)            # bias + relu in f32

    h2 = jnp.dot(h1.astype(jnp.bfloat16), w2_ref[...],
                 preferred_element_type=jnp.float32)
    h2 = jnp.maximum(h2 + b2_ref[...], 0.0)

    # NOTE(v5e): h1/h2 f32 intermediates exceed the 64-vreg file and round-trip
    # VMEM; if a bundle dump shows the single v5e vst slot binding, sub-tile the
    # chain over ~128-row chunks of this tile.  Neutral on v6e/v7x, so not done
    # by default.
    h3 = jnp.dot(h2.astype(jnp.bfloat16), w3_ref[...],
                 preferred_element_type=jnp.float32)
    # out_dim is tiny (e.g. 4 actions) -> masked vst; store volume negligible.
    o_ref[...] = (h3 + b3_ref[...]).astype(o_ref.dtype)


def _vmem_estimate_bytes(tb, in_dim, out_dim):
    """Rough per-step VMEM footprint of the fused chain (with double buffers)."""
    est = 0
    est += 2 * tb * in_dim * 4          # x tile, f32, double-buffered
    est += 2 * tb * out_dim * 4         # out tile, f32, double-buffered
    est += 2 * (in_dim * H1 * 2 + H1 * H2 * 2 + H2 * out_dim * 2
                + (H1 + H2 + out_dim) * 4)              # weights + biases
    est += tb * (H1 * 4 + H1 * 2 + H2 * 4 + H2 * 2 + out_dim * 4)  # h1/h2/h3
    return est


def dqn_forward(x, params, *, block_b=2048):
    """x: (B, input_dim) float32.

    params: w1/w2/w3 as (in, out) bfloat16, b1/b2/b3 as (1, out) float32.
    Returns (B, output_dim) float32 Q-values.
    """
    w1, b1 = params["w1"], params["b1"]
    w2, b2 = params["w2"], params["b2"]
    w3, b3 = params["w3"], params["b3"]

    B, in_dim = x.shape
    out_dim = w3.shape[1]

    # Batch tile: multiple of 16 (bf16 sublane packing + (8,128) rule), whole
    # batch in one step when it fits, never larger than the requested block_b.
    block_b = max(16, (block_b // 16) * 16)
    tb = min(block_b, _round_up(max(B, 16), 16))
    b_pad = _round_up(B, tb)
    if b_pad != B:
        x = jnp.pad(x, ((0, b_pad - B), (0, 0)))

    grid = (b_pad // tb,)

    batch_spec = lambda d: pl.BlockSpec((tb, d), lambda i: (i, 0))
    const_spec = lambda a: pl.BlockSpec(a.shape, lambda i: (0, 0))

    flops = 2 * b_pad * (in_dim * H1 + H1 * H2 + H2 * out_dim)
    bytes_accessed = (
        b_pad * in_dim * 4                                    # x (f32 in)
        + sum(a.size * a.dtype.itemsize for a in (w1, b1, w2, b2, w3, b3))
        + b_pad * out_dim * 4                                 # out (f32)
    )

    # Raise the scoped-VMEM limit only when a large caller-chosen tile needs
    # it (v5e default is 16 MiB; v6e/v7x default 32 MiB). Cap well under v7x's
    # 64 MiB physical VMEM.
    cp_kwargs = dict(dimension_semantics=("parallel",))
    vmem_est = _vmem_estimate_bytes(tb, in_dim, out_dim)
    if vmem_est > (12 << 20):
        cp_kwargs["vmem_limit_bytes"] = min(int(vmem_est * 3 // 2), 48 << 20)

    out = pl.pallas_call(
        dqn_mlp_kernel,
        out_shape=jax.ShapeDtypeStruct((b_pad, out_dim), jnp.float32),
        grid=grid,
        in_specs=[
            batch_spec(in_dim),                       # x: tiled over batch (f32)
            const_spec(w1), const_spec(b1),           # weights/biases: resident
            const_spec(w2), const_spec(b2),
            const_spec(w3), const_spec(b3),
        ],
        out_specs=batch_spec(out_dim),
        compiler_params=pltpu.CompilerParams(**cp_kwargs),
        cost_estimate=pl.CostEstimate(
            flops=flops, transcendentals=0, bytes_accessed=bytes_accessed),
    )(x, w1, b1, w2, b2, w3, b3)

    return out[:B]


def init_params(input_dim, output_dim, key):
    """Synthetic init matching the nn.Linear shapes of DQN.

    Weights stored as (in, out) bf16 (transpose of PyTorch's (out, in)),
    biases as (1, out) f32.
    """
    ks = jax.random.split(key, 6)

    def lin(kw, kb, fan_in, fan_out):
        bound = 1.0 / jnp.sqrt(fan_in)  # PyTorch default U(-1/sqrt(fan_in), ...)
        w = jax.random.uniform(kw, (fan_in, fan_out), jnp.float32, -bound, bound)
        b = jax.random.uniform(kb, (1, fan_out), jnp.float32, -bound, bound)
        return w.astype(jnp.bfloat16), b

    w1, b1 = lin(ks[0], ks[1], input_dim, H1)
    w2, b2 = lin(ks[2], ks[3], H1, H2)
    w3, b3 = lin(ks[4], ks[5], H2, output_dim)
    return {"w1": w1, "b1": b1, "w2": w2, "b2": b2, "w3": w3, "b3": b3}


def dqn_forward_ref(x, p):
    """Pure-JAX reference mirroring the kernel's bf16-in / f32-accumulate math."""
    f32, bf16 = jnp.float32, jnp.bfloat16
    h = x.astype(bf16).astype(f32)
    h = jnp.maximum(h @ p["w1"].astype(f32) + p["b1"], 0.0)
    h = h.astype(bf16).astype(f32)
    h = jnp.maximum(h @ p["w2"].astype(f32) + p["b2"], 0.0)
    h = h.astype(bf16).astype(f32)
    return h @ p["w3"].astype(f32) + p["b3"]


if __name__ == "__main__":
    key = jax.random.PRNGKey(0)
    k_param, k_x1, k_x2 = jax.random.split(key, 3)

    input_dim, output_dim = 8, 4  # small RL-style state/action dims
    params = init_params(input_dim, output_dim, k_param)

    # Case 1: tiny batch -> single grid step, whole batch in one tile.
    x_small = jax.random.normal(k_x1, (8, input_dim), jnp.float32)
    out_small = jax.block_until_ready(dqn_forward(x_small, params))
    ref_small = dqn_forward_ref(x_small, params)
    assert out_small.shape == (8, output_dim)
    assert jnp.allclose(out_small, ref_small, atol=1e-3, rtol=1e-3), \
        "small-batch mismatch vs JAX reference"

    # Case 2: non-multiple batch with an explicit smaller tile -> multi-step
    # grid, weight residency across steps, and the padding path all exercised.
    x_big = jax.random.normal(k_x2, (300, input_dim), jnp.float32)
    out_big = jax.block_until_ready(dqn_forward(x_big, params, block_b=128))
    ref_big = dqn_forward_ref(x_big, params)
    assert out_big.shape == (300, output_dim)
    assert jnp.allclose(out_big, ref_big, atol=1e-3, rtol=1e-3), \
        "tiled-batch mismatch vs JAX reference"

    print("KERNEL_OK")
</pallas_src>

<mosaic_0001>
module attributes {stable_mosaic.version = 11 : i64} {
  func.func @dqn_mlp_kernel(%arg0: i32, %arg1: memref<16x8xf32, #tpu.memory_space<vmem>>, %arg2: memref<8x128xbf16, #tpu.memory_space<vmem>>, %arg3: memref<1x128xf32, #tpu.memory_space<vmem>>, %arg4: memref<128x256xbf16, #tpu.memory_space<vmem>>, %arg5: memref<1x256xf32, #tpu.memory_space<vmem>>, %arg6: memref<256x4xbf16, #tpu.memory_space<vmem>>, %arg7: memref<1x4xf32, #tpu.memory_space<vmem>>, %arg8: memref<16x4xf32, #tpu.memory_space<vmem>>) attributes {dimension_semantics = [#tpu.dimension_semantics<parallel>], iteration_bounds = array<i64: 1>, scalar_prefetch = 0 : i64, scratch_operands = 0 : i64, tpu.core_type = #tpu.core_type<tc>, window_params = [{transform_indices = @transform_0, window_bounds = array<i64: 16, 8>}, {pipeline_mode = #tpu.pipeline_mode<synchronous>, transform_indices = @transform_1, window_bounds = array<i64: 8, 128>}, {pipeline_mode = #tpu.pipeline_mode<synchronous>, transform_indices = @transform_2, window_bounds = array<i64: 1, 128>}, {pipeline_mode = #tpu.pipeline_mode<synchronous>, transform_indices = @transform_3, window_bounds = array<i64: 128, 256>}, {pipeline_mode = #tpu.pipeline_mode<synchronous>, transform_indices = @transform_4, window_bounds = array<i64: 1, 256>}, {pipeline_mode = #tpu.pipeline_mode<synchronous>, transform_indices = @transform_5, window_bounds = array<i64: 256, 4>}, {pipeline_mode = #tpu.pipeline_mode<synchronous>, transform_indices = @transform_6, window_bounds = array<i64: 1, 4>}, {transform_indices = @transform_7, window_bounds = array<i64: 16, 4>}]} {
    %c0 = arith.constant 0 : index
    %c0_0 = arith.constant 0 : index
    %0 = vector.load %arg1[%c0, %c0_0] : memref<16x8xf32, #tpu.memory_space<vmem>>, vector<16x8xf32>
    %1 = arith.truncf %0 : vector<16x8xf32> to vector<16x8xbf16>
    %c0_1 = arith.constant 0 : index
    %c0_2 = arith.constant 0 : index
    %2 = vector.load %arg2[%c0_1, %c0_2] : memref<8x128xbf16, #tpu.memory_space<vmem>>, vector<8x128xbf16>
    %cst = arith.constant dense<0.000000e+00> : vector<16x128xf32>
    %3 = tpu.matmul %1, %2, %cst {dimension_numbers = #tpu.dot_dimension_numbers<[1], [0], [0], [1], [0, 0, 1, 1], [], []>} : vector<16x8xbf16>, vector<8x128xbf16>, vector<16x128xf32> -> vector<16x128xf32>
    %c0_3 = arith.constant 0 : index
    %c0_4 = arith.constant 0 : index
    %4 = vector.load %arg3[%c0_3, %c0_4] : memref<1x128xf32, #tpu.memory_space<vmem>>, vector<1x128xf32>
    %5 = vector.broadcast %4 : vector<1x128xf32> to vector<16x128xf32>
    %6 = arith.addf %3, %5 : vector<16x128xf32>
    %cst_5 = arith.constant 0.000000e+00 : f32
    %7 = vector.broadcast %cst_5 : f32 to vector<16x128xf32>
    %8 = arith.maximumf %6, %7 : vector<16x128xf32>
    %9 = arith.truncf %8 : vector<16x128xf32> to vector<16x128xbf16>
    %c0_6 = arith.constant 0 : index
    %c0_7 = arith.constant 0 : index
    %10 = vector.load %arg4[%c0_6, %c0_7] : memref<128x256xbf16, #tpu.memory_space<vmem>>, vector<128x256xbf16>
    %cst_8 = arith.constant dense<0.000000e+00> : vector<16x256xf32>
    %11 = tpu.matmul %9, %10, %cst_8 {dimension_numbers = #tpu.dot_dimension_numbers<[1], [0], [0], [1], [0, 0, 1, 1], [], []>} : vector<16x128xbf16>, vector<128x256xbf16>, vector<16x256xf32> -> vector<16x256xf32>
    %c0_9 = arith.constant 0 : index
    %c0_10 = arith.constant 0 : index
    %12 = vector.load %arg5[%c0_9, %c0_10] : memref<1x256xf32, #tpu.memory_space<vmem>>, vector<1x256xf32>
    %13 = vector.broadcast %12 : vector<1x256xf32> to vector<16x256xf32>
    %14 = arith.addf %11, %13 : vector<16x256xf32>
    %cst_11 = arith.constant 0.000000e+00 : f32
    %15 = vector.broadcast %cst_11 : f32 to vector<16x256xf32>
    %16 = arith.maximumf %14, %15 : vector<16x256xf32>
    %17 = arith.truncf %16 : vector<16x256xf32> to vector<16x256xbf16>
    %c0_12 = arith.constant 0 : index
    %c0_13 = arith.constant 0 : index
    %18 = vector.load %arg6[%c0_12, %c0_13] : memref<256x4xbf16, #tpu.memory_space<vmem>>, vector<256x4xbf16>
    %cst_14 = arith.constant dense<0.000000e+00> : vector<16x4xf32>
    %19 = tpu.matmul %17, %18, %cst_14 {dimension_numbers = #tpu.dot_dimension_numbers<[1], [0], [0], [1], [0, 0, 1, 1], [], []>} : vector<16x256xbf16>, vector<256x4xbf16>, vector<16x4xf32> -> vector<16x4xf32>
    %c0_15 = arith.constant 0 : index
    %c0_16 = arith.constant 0 : index
    %20 = vector.load %arg7[%c0_15, %c0_16] : memref<1x4xf32, #tpu.memory_space<vmem>>, vector<1x4xf32>
    %21 = vector.broadcast %20 : vector<1x4xf32> to vector<16x4xf32>
    %22 = arith.addf %19, %21 : vector<16x4xf32>
    %c0_17 = arith.constant 0 : index
    %c0_18 = arith.constant 0 : index
    %23 = vector.load %arg8[%c0_17, %c0_18] : memref<16x4xf32, #tpu.memory_space<vmem>>, vector<16x4xf32>
    tpu.vector_store %arg8[%c0_17, %c0_18], %22 {strides = array<i32>} : memref<16x4xf32, #tpu.memory_space<vmem>>, vector<16x4xf32>,
    return
  }
  func.func @transform_0(%arg0: i32) -> (i32, i32) {
    %c0_i32 = arith.constant 0 : i32
    %c0_i32_0 = arith.constant 0 : i32
    return %arg0, %c0_i32 : i32, i32
  }
  func.func @transform_1(%arg0: i32) -> (i32, i32) {
    %c0_i32 = arith.constant 0 : i32
    %c0_i32_0 = arith.constant 0 : i32
    %c0_i32_1 = arith.constant 0 : i32
    return %c0_i32, %c0_i32_0 : i32, i32
  }
  func.func @transform_2(%arg0: i32) -> (i32, i32) {
    %c0_i32 = arith.constant 0 : i32
    %c0_i32_0 = arith.constant 0 : i32
    %c0_i32_1 = arith.constant 0 : i32
    return %c0_i32, %c0_i32_0 : i32, i32
  }
  func.func @transform_3(%arg0: i32) -> (i32, i32) {
    %c0_i32 = arith.constant 0 : i32
    %c0_i32_0 = arith.constant 0 : i32
    %c0_i32_1 = arith.constant 0 : i32
    return %c0_i32, %c0_i32_0 : i32, i32
  }
  func.func @transform_4(%arg0: i32) -> (i32, i32) {
    %c0_i32 = arith.constant 0 : i32
    %c0_i32_0 = arith.constant 0 : i32
    %c0_i32_1 = arith.constant 0 : i32
    return %c0_i32, %c0_i32_0 : i32, i32
  }
  func.func @transform_5(%arg0: i32) -> (i32, i32) {
    %c0_i32 = arith.constant 0 : i32
    %c0_i32_0 = arith.constant 0 : i32
    %c0_i32_1 = arith.constant 0 : i32
    return %c0_i32, %c0_i32_0 : i32, i32
  }
  func.func @transform_6(%arg0: i32) -> (i32, i32) {
    %c0_i32 = arith.constant 0 : i32
    %c0_i32_0 = arith.constant 0 : i32
    %c0_i32_1 = arith.constant 0 : i32
    return %c0_i32, %c0_i32_0 : i32, i32
  }
  func.func @transform_7(%arg0: i32) -> (i32, i32) {
    %c0_i32 = arith.constant 0 : i32
    %c0_i32_0 = arith.constant 0 : i32
    return %arg0, %c0_i32 : i32, i32
  }
}

</mosaic_0001>

<llo_original>
// kernel: tpu_custom_call.1
$region0: #{tpu_custom_call.1}
  #allocation0 [shape = 'u32[]', space=smem, size = 0x4, offset = 0x4, fixed_abs, tag = 'smem constant byte address 0x4 - core index']
  #allocation1 [shape = 'u32[144,128]{1,0:T(1,128)}', space=vmem, size = 0x12000, scoped, tag = 'internal scratch']
  %s0 = inlined_call_operand.vmem [shape: f32[16,8], index: 0, kind: input, shape index: {}]
  %s1 = inlined_call_operand.vmem [shape: bf16[8,128], index: 1, kind: input, shape index: {}]
  %s2 = inlined_call_operand.vmem [shape: f32[1,128], index: 2, kind: input, shape index: {}]
  %s3 = inlined_call_operand.vmem [shape: bf16[128,256], index: 3, kind: input, shape index: {}]
  %s4 = inlined_call_operand.vmem [shape: f32[1,256], index: 4, kind: input, shape index: {}]
  %s5 = inlined_call_operand.vmem [shape: bf16[256,4], index: 5, kind: input, shape index: {}]
  %s6 = inlined_call_operand.vmem [shape: f32[1,4], index: 6, kind: input, shape index: {}]
  %s7 = inlined_call_operand.vmem [shape: f32[16,4], index: 7, kind: output, shape index: {}]
  %s8 = sld [smem:[#allocation0]]
  $region38: #{tpu_custom_call.1} parent=0
    _
  %s10 = ssub.s32 1, %s8
  %s11 = scalar_select 0, %s10, %s8
  // Predicated region
  $region2: #{tpu_custom_call.1} parent=0 // pred_check
    _
  $region3: #{tpu_custom_call.1} parent=0 // pred_check_branch
    %13 = sbr.rel (0) target = $region5
  $region4: #{tpu_custom_call.1} parent=0 // pred_region
    _
  $region5: #{tpu_custom_call.1} parent=0 // pred_fallthru
    _
  // Predicated region
  $region6: #{tpu_custom_call.1} parent=0 // pred_check
    _
  $region7: #{tpu_custom_call.1} parent=0 // pred_check_branch
    %15 = sbr.rel (0) target = $region9
  $region8: #{tpu_custom_call.1} parent=0 // pred_region
    _
  $region9: #{tpu_custom_call.1} parent=0 // pred_fallthru
    _
  // Predicated region
  $region10: #{tpu_custom_call.1} parent=0 // pred_check
    _
  $region11: #{tpu_custom_call.1} parent=0 // pred_check_branch
    %17 = sbr.rel (0) target = $region13
  $region12: #{tpu_custom_call.1} parent=0 // pred_region
    _
  $region13: #{tpu_custom_call.1} parent=0 // pred_fallthru
    _
  // Predicated region
  $region14: #{tpu_custom_call.1} parent=0 // pred_check
    _
  $region15: #{tpu_custom_call.1} parent=0 // pred_check_branch
    %19 = sbr.rel (0) target = $region17
  $region16: #{tpu_custom_call.1} parent=0 // pred_region
    _
  $region17: #{tpu_custom_call.1} parent=0 // pred_fallthru
    _
  // Predicated region
  $region18: #{tpu_custom_call.1} parent=0 // pred_check
    _
  $region19: #{tpu_custom_call.1} parent=0 // pred_check_branch
    %21 = sbr.rel (0) target = $region21
  $region20: #{tpu_custom_call.1} parent=0 // pred_region
    _
  $region21: #{tpu_custom_call.1} parent=0 // pred_fallthru
    _
  // Predicated region
  $region22: #{tpu_custom_call.1} parent=0 // pred_check
    _
  $region23: #{tpu_custom_call.1} parent=0 // pred_check_branch
    %23 = sbr.rel (0) target = $region25
  $region24: #{tpu_custom_call.1} parent=0 // pred_region
    _
  $region25: #{tpu_custom_call.1} parent=0 // pred_fallthru
    _
  // Predicated region
  $region26: #{tpu_custom_call.1} parent=0 // pred_check
    _
  $region27: #{tpu_custom_call.1} parent=0 // pred_check_branch
    %25 = sbr.rel (0) target = $region29
  $region28: #{tpu_custom_call.1} parent=0 // pred_region
    _
  $region29: #{tpu_custom_call.1} parent=0 // pred_fallthru
    _
  %v27 = vld [vmem:[%s0] sm:$0xff]
  %v28 = vld [vmem:[%s0 + $0x8] sm:$0xff]
  %v29 = vpack.c.bf16 %v28, %v27
  %v30 = vld [vmem:[%s1] sm:$0xf]
  %v31 = vld [vmem:[%s2] sm:$0x1]
  %v33 = vlaneseq
  %v34 = vshrl.u32 %v33, 7
  %v35 = vsub.s32 0, %v34
  %v36 = vrot.slane %v31, %v35
  %vm38 = vcmask 64512
  %v40 = vsel %vm38, %v29, 0
  %vm42 = vcmask 1043456
  %v44 = vsel %vm42, %v30, 0
  %46 = vmatprep.subr.bf16.mxu0 0
  %47 = vmatpush1.bf16.msra.mxu0 %v44
  %48 = vmatprep.subr.bf16.mxu0 0
  %49 = vmatpush1.bf16.msra.mxu0 0
  %50 = vmatprep.subr.bf16.mxu0 0
  %51 = vmatpush1.bf16.msra.mxu0 0
  %52 = vmatprep.subr.bf16.mxu0 0
  %53 = vmatpush1.bf16.msra.mxu0 0
  %54 = vmatprep.subr.bf16.mxu0 0
  %55 = vmatpush1.bf16.msra.mxu0 0
  %56 = vmatprep.subr.bf16.mxu0 0
  %57 = vmatpush1.bf16.msra.mxu0 0
  %58 = vmatprep.subr.bf16.mxu0 0
  %59 = vmatpush1.bf16.msra.mxu0 0
  %60 = vmatprep.subr.bf16.mxu0 0
  %61 = vmatpush1.bf16.msra.mxu0 0
  %62 = vmatprep.subr.bf16.mxu0 0
  %63 = vmatpush1.bf16.msra.mxu0 0
  %64 = vmatprep.subr.bf16.mxu0 0
  %65 = vmatpush1.bf16.msra.mxu0 0
  %66 = vmatprep.subr.bf16.mxu0 0
  %67 = vmatpush1.bf16.msra.mxu0 0
  %68 = vmatprep.subr.bf16.mxu0 0
  %69 = vmatpush1.bf16.msra.mxu0 0
  %70 = vmatprep.subr.bf16.mxu0 0
  %71 = vmatpush1.bf16.msra.mxu0 0
  %72 = vmatprep.subr.bf16.mxu0 0
  %73 = vmatpush1.bf16.msra.mxu0 0
  %74 = vmatprep.subr.bf16.mxu0 0
  %75 = vmatpush1.bf16.msra.mxu0 0
  %76 = vmatprep.subr.bf16.mxu0 0
  %77 = vmatpush1.bf16.msra.mxu0 0
  %78 = vmatprep.mubr.bf16.mxu0 0
  %79 = vmatmul.mubr.bf16.gmra.mrb[0].mxu0 %v40
  %v80 = vpop.f32.mrb[0].mxu0
  %v81 = vadd.f32 %v36, %v80
  %v82 = vpop.f32.mrb[0].mxu0
  %v83 = vpop.f32.mrb[0].mxu0
  %v84 = vadd.f32 %v36, %v83
  %v85 = vpop.f32.mrb[0].mxu0
  %86 = vdwg.mxu0
  %v87 = vmax.f32 %v81, 0.0
  %v88 = vmax.f32 %v84, 0.0
  %v89 = vpack.c.bf16 %v88, %v87
  %v90 = vld [vmem:[%s3] sm:$0xff]
  %v91 = vld [vmem:[%s3 + $0x8] sm:$0xff]
  %v92 = vld [vmem:[%s3 + $0x10] sm:$0xff]
  %v93 = vld [vmem:[%s3 + $0x18] sm:$0xff]
  %v94 = vld [vmem:[%s3 + $0x20] sm:$0xff]
  %v95 = vld [vmem:[%s3 + $0x28] sm:$0xff]
  %v96 = vld [vmem:[%s3 + $0x30] sm:$0xff]
  %v97 = vld [vmem:[%s3 + $0x38] sm:$0xff]
  %v98 = vld [vmem:[%s3 + $0x40] sm:$0xff]
  %v99 = vld [vmem:[%s3 + $0x48] sm:$0xff]
  %v100 = vld [vmem:[%s3 + $0x50] sm:$0xff]
  %v101 = vld [vmem:[%s3 + $0x58] sm:$0xff]
  %v102 = vld [vmem:[%s3 + $0x60] sm:$0xff]
  %v103 = vld [vmem:[%s3 + $0x68] sm:$0xff]
  %v104 = vld [vmem:[%s3 + $0x70] sm:$0xff]
  %v105 = vld [vmem:[%s3 + $0x78] sm:$0xff]
  %v106 = vld [vmem:[%s4] sm:$0x3]
  %v108 = vlaneseq
  %v109 = vshrl.u32 %v108, 7
  %v110 = vsub.s32 0, %v109
  %v111 = vrot.slane %v106, %v110
  %v112 = vlaneseq
  %v113 = vshrl.u32 %v112, 7
  %v114 = vsub.s32 1, %v113
  %v115 = vrot.slane %v106, %v114
  %v134 = vunpack.c.l.b16 %v90
  %v135 = vunpack.c.h.b16 %v90
  %v136 = vunpack.c.l.b16 %v91
  %v137 = vunpack.c.h.b16 %v91
  %v138 = vunpack.c.l.b16 %v92
  %v139 = vunpack.c.h.b16 %v92
  %v140 = vunpack.c.l.b16 %v93
  %v141 = vunpack.c.h.b16 %v93
  %v142 = vunpack.c.l.b16 %v94
  %v143 = vunpack.c.h.b16 %v94
  %v144 = vunpack.c.l.b16 %v95
  %v145 = vunpack.c.h.b16 %v95
  %v146 = vunpack.c.l.b16 %v96
  %v147 = vunpack.c.h.b16 %v96
  %v148 = vunpack.c.l.b16 %v97
  %v149 = vunpack.c.h.b16 %v97
  %v150 = vunpack.c.l.b16 %v98
  %v151 = vunpack.c.h.b16 %v98
  %v152 = vunpack.c.l.b16 %v99
  %v153 = vunpack.c.h.b16 %v99
  %v154 = vunpack.c.l.b16 %v100
  %v155 = vunpack.c.h.b16 %v100
  %v156 = vunpack.c.l.b16 %v101
  %v157 = vunpack.c.h.b16 %v101
  %v158 = vunpack.c.l.b16 %v102
  %v159 = vunpack.c.h.b16 %v102
  %v160 = vunpack.c.l.b16 %v103
  %v161 = vunpack.c.h.b16 %v103
  %v162 = vunpack.c.l.b16 %v104
  %v163 = vunpack.c.h.b16 %v104
  %v164 = vunpack.c.l.b16 %v105
  %v165 = vunpack.c.h.b16 %v105
  %v166 = vpack.c.b16 %v136, %v134
  %v167 = vpack.c.b16 %v137, %v135
  %v168 = vpack.c.b16 %v140, %v138
  %v169 = vpack.c.b16 %v141, %v139
  %v170 = vpack.c.b16 %v144, %v142
  %v171 = vpack.c.b16 %v145, %v143
  %v172 = vpack.c.b16 %v148, %v146
  %v173 = vpack.c.b16 %v149, %v147
  %v174 = vpack.c.b16 %v152, %v150
  %v175 = vpack.c.b16 %v153, %v151
  %v176 = vpack.c.b16 %v156, %v154
  %v177 = vpack.c.b16 %v157, %v155
  %v178 = vpack.c.b16 %v160, %v158
  %v179 = vpack.c.b16 %v161, %v159
  %v180 = vpack.c.b16 %v164, %v162
  %v181 = vpack.c.b16 %v165, %v163
  %198 = vmatprep.subr.bf16.mxu0 %v167
  %199 = vmatpush1.bf16.msra.mxu0 %v166
  %200 = vmatprep.subr.bf16.mxu0 %v169
  %201 = vmatpush1.bf16.msra.mxu0 %v168
  %202 = vmatprep.subr.bf16.mxu0 %v171
  %203 = vmatpush1.bf16.msra.mxu0 %v170
  %204 = vmatprep.subr.bf16.mxu0 %v173
  %205 = vmatpush1.bf16.msra.mxu0 %v172
  %206 = vmatprep.subr.bf16.mxu0 %v175
  %207 = vmatpush1.bf16.msra.mxu0 %v174
  %208 = vmatprep.subr.bf16.mxu0 %v177
  %209 = vmatpush1.bf16.msra.mxu0 %v176
  %210 = vmatprep.subr.bf16.mxu0 %v179
  %211 = vmatpush1.bf16.msra.mxu0 %v178
  %212 = vmatprep.subr.bf16.mxu0 %v181
  %213 = vmatpush1.bf16.msra.mxu0 %v180
  %214 = vmatprep.subr.bf16.mxu0 0
  %215 = vmatpush1.bf16.msra.mxu0 0
  %216 = vmatprep.subr.bf16.mxu0 0
  %217 = vmatpush1.bf16.msra.mxu0 0
  %218 = vmatprep.subr.bf16.mxu0 0
  %219 = vmatpush1.bf16.msra.mxu0 0
  %220 = vmatprep.subr.bf16.mxu0 0
  %221 = vmatpush1.bf16.msra.mxu0 0
  %222 = vmatprep.subr.bf16.mxu0 0
  %223 = vmatpush1.bf16.msra.mxu0 0
  %224 = vmatprep.subr.bf16.mxu0 0
  %225 = vmatpush1.bf16.msra.mxu0 0
  %226 = vmatprep.subr.bf16.mxu0 0
  %227 = vmatpush1.bf16.msra.mxu0 0
  %228 = vmatprep.subr.bf16.mxu0 0
  %229 = vmatpush1.bf16.msra.mxu0 0
  %230 = vmatprep.mubr.bf16.mxu0 0
  %231 = vmatmul.mubr.bf16.gmra.mrb[0].mxu0 %v89
  %v232 = vpop.f32.mrb[0].mxu0
  %v233 = vadd.f32 %v111, %v232
  %v234 = vpop.f32.mrb[0].mxu0
  %v235 = vadd.f32 %v115, %v234
  %v236 = vpop.f32.mrb[0].mxu0
  %v237 = vadd.f32 %v111, %v236
  %v238 = vpop.f32.mrb[0].mxu0
  %v239 = vadd.f32 %v115, %v238
  %240 = vdwg.mxu0
  %v241 = vmax.f32 %v233, 0.0
  %v242 = vmax.f32 %v235, 0.0
  %v243 = vmax.f32 %v237, 0.0
  %v244 = vmax.f32 %v239, 0.0
  %v245 = vpack.c.bf16 %v243, %v241
  %v246 = vpack.c.bf16 %v244, %v242
  %v247 = vld [vmem:[%s5] sm:$0xf]
  %v248 = vld [vmem:[%s5 + $0x4] sm:$0xf]
  %v249 = vld [vmem:[%s5 + $0x8] sm:$0xf]
  %v250 = vld [vmem:[%s5 + $0xc] sm:$0xf]
  %v251 = vld [vmem:[%s5 + $0x10] sm:$0xf]
  %v252 = vld [vmem:[%s5 + $0x14] sm:$0xf]
  %v253 = vld [vmem:[%s5 + $0x18] sm:$0xf]
  %v254 = vld [vmem:[%s5 + $0x1c] sm:$0xf]
  %v255 = vld [vmem:[%s5 + $0x20] sm:$0xf]
  %v256 = vld [vmem:[%s5 + $0x24] sm:$0xf]
  %v257 = vld [vmem:[%s5 + $0x28] sm:$0xf]
  %v258 = vld [vmem:[%s5 + $0x2c] sm:$0xf]
  %v259 = vld [vmem:[%s5 + $0x30] sm:$0xf]
  %v260 = vld [vmem:[%s5 + $0x34] sm:$0xf]
  %v261 = vld [vmem:[%s5 + $0x38] sm:$0xf]
  %v262 = vld [vmem:[%s5 + $0x3c] sm:$0xf]
  %v263 = vld [vmem:[%s5 + $0x40] sm:$0xf]
  %v264 = vld [vmem:[%s5 + $0x44] sm:$0xf]
  %v265 = vld [vmem:[%s5 + $0x48] sm:$0xf]
  %v266 = vld [vmem:[%s5 + $0x4c] sm:$0xf]
  %v267 = vld [vmem:[%s5 + $0x50] sm:$0xf]
  %v268 = vld [vmem:[%s5 + $0x54] sm:$0xf]
  %v269 = vld [vmem:[%s5 + $0x58] sm:$0xf]
  %v270 = vld [vmem:[%s5 + $0x5c] sm:$0xf]
  %v271 = vld [vmem:[%s5 + $0x60] sm:$0xf]
  %v272 = vld [vmem:[%s5 + $0x64] sm:$0xf]
  %v273 = vld [vmem:[%s5 + $0x68] sm:$0xf]
  %v274 = vld [vmem:[%s5 + $0x6c] sm:$0xf]
  %v275 = vld [vmem:[%s5 + $0x70] sm:$0xf]
  %v276 = vld [vmem:[%s5 + $0x74] sm:$0xf]
  %v277 = vld [vmem:[%s5 + $0x78] sm:$0xf]
  %v278 = vld [vmem:[%s5 + $0x7c] sm:$0xf]
  %v279 = vld [vmem:[%s6] sm:$0x1]
  %v281 = vlaneseq
  %v282 = vshrl.u32 %v281, 7
  %v283 = vsub.s32 0, %v282
  %v284 = vrot.slane %v279, %v283
  %v318 = vunpack.c.l.b16 %v247
  %v319 = vunpack.c.l.b16 %v248
  %v320 = vunpack.c.l.b16 %v249
  %v321 = vunpack.c.l.b16 %v250
  %v322 = vunpack.c.l.b16 %v251
  %v323 = vunpack.c.l.b16 %v252
  %v324 = vunpack.c.l.b16 %v253
  %v325 = vunpack.c.l.b16 %v254
  %v326 = vunpack.c.l.b16 %v255
  %v327 = vunpack.c.l.b16 %v256
  %v328 = vunpack.c.l.b16 %v257
  %v329 = vunpack.c.l.b16 %v258
  %v330 = vunpack.c.l.b16 %v259
  %v331 = vunpack.c.l.b16 %v260
  %v332 = vunpack.c.l.b16 %v261
  %v333 = vunpack.c.l.b16 %v262
  %v334 = vunpack.c.l.b16 %v263
  %v335 = vunpack.c.l.b16 %v264
  %v336 = vunpack.c.l.b16 %v265
  %v337 = vunpack.c.l.b16 %v266
  %v338 = vunpack.c.l.b16 %v267
  %v339 = vunpack.c.l.b16 %v268
  %v340 = vunpack.c.l.b16 %v269
  %v341 = vunpack.c.l.b16 %v270
  %v342 = vunpack.c.l.b16 %v271
  %v343 = vunpack.c.l.b16 %v272
  %v344 = vunpack.c.l.b16 %v273
  %v345 = vunpack.c.l.b16 %v274
  %v346 = vunpack.c.l.b16 %v275
  %v347 = vunpack.c.l.b16 %v276
  %v348 = vunpack.c.l.b16 %v277
  %v349 = vunpack.c.l.b16 %v278
  %v350 = vpack.c.b16 %v319, %v318
  %v351 = vpack.c.b16 %v321, %v320
  %v352 = vpack.c.b16 %v323, %v322
  %v353 = vpack.c.b16 %v325, %v324
  %v354 = vpack.c.b16 %v327, %v326
  %v355 = vpack.c.b16 %v329, %v328
  %v356 = vpack.c.b16 %v331, %v330
  %v357 = vpack.c.b16 %v333, %v332
  %v358 = vpack.c.b16 %v335, %v334
  %v359 = vpack.c.b16 %v337, %v336
  %v360 = vpack.c.b16 %v339, %v338
  %v361 = vpack.c.b16 %v341, %v340
  %v362 = vpack.c.b16 %v343, %v342
  %v363 = vpack.c.b16 %v345, %v344
  %v364 = vpack.c.b16 %v347, %v346
  %v365 = vpack.c.b16 %v349, %v348
  %382 = vmatprep.subr.bf16.mxu0 0
  %383 = vmatpush1.bf16.msra.mxu0 %v350
  %384 = vmatprep.subr.bf16.mxu0 0
  %385 = vmatpush1.bf16.msra.mxu0 %v351
  %386 = vmatprep.subr.bf16.mxu0 0
  %387 = vmatpush1.bf16.msra.mxu0 %v352
  %388 = vmatprep.subr.bf16.mxu0 0
  %389 = vmatpush1.bf16.msra.mxu0 %v353
  %390 = vmatprep.subr.bf16.mxu0 0
  %391 = vmatpush1.bf16.msra.mxu0 %v354
  %392 = vmatprep.subr.bf16.mxu0 0
  %393 = vmatpush1.bf16.msra.mxu0 %v355
  %394 = vmatprep.subr.bf16.mxu0 0
  %395 = vmatpush1.bf16.msra.mxu0 %v356
  %396 = vmatprep.subr.bf16.mxu0 0
  %397 = vmatpush1.bf16.msra.mxu0 %v357
  %398 = vmatprep.subr.bf16.mxu0 0
  %399 = vmatpush1.bf16.msra.mxu0 %v358
  %400 = vmatprep.subr.bf16.mxu0 0
  %401 = vmatpush1.bf16.msra.mxu0 %v359
  %402 = vmatprep.subr.bf16.mxu0 0
  %403 = vmatpush1.bf16.msra.mxu0 %v360
  %404 = vmatprep.subr.bf16.mxu0 0
  %405 = vmatpush1.bf16.msra.mxu0 %v361
  %406 = vmatprep.subr.bf16.mxu0 0
  %407 = vmatpush1.bf16.msra.mxu0 %v362
  %408 = vmatprep.subr.bf16.mxu0 0
  %409 = vmatpush1.bf16.msra.mxu0 %v363
  %410 = vmatprep.subr.bf16.mxu0 0
  %411 = vmatpush1.bf16.msra.mxu0 %v364
  %412 = vmatprep.subr.bf16.mxu0 0
  %413 = vmatpush1.bf16.msra.mxu0 %v365
  %414 = vmatprep.mubr.bf16.mxu0 %v246
  %415 = vmatmul.mubr.bf16.gmra.mrb[0].mxu0 %v245
  %v416 = vpop.f32.mrb[0].mxu0
  %v417 = vadd.f32 %v284, %v416
  %v418 = vpop.f32.mrb[0].mxu0
  %v419 = vpop.f32.mrb[0].mxu0
  %v420 = vadd.f32 %v284, %v419
  %v421 = vpop.f32.mrb[0].mxu0
  %422 = vdwg.mxu0
  %vm423 = vcmask 31744
  %424 = vst.msk [vmem:[%s7] sm:$0xff] %vm423, %v417
  %425 = vst.msk [vmem:[%s7 + $0x8] sm:$0xff] %vm423, %v420
  // Predicated region
  $region30: #{tpu_custom_call.1} parent=0 // pred_check
    _
  $region31: #{tpu_custom_call.1} parent=0 // pred_check_branch
    %427 = sbr.rel (0) target = $region33
  $region32: #{tpu_custom_call.1} parent=0 // pred_region
    _
  $region33: #{tpu_custom_call.1} parent=0 // pred_fallthru
    _
  // Predicated region
  $region34: #{tpu_custom_call.1} parent=0 // pred_check
    _
  $region35: #{tpu_custom_call.1} parent=0 // pred_check_branch
    %429 = sbr.rel (0) target = $region37
  $region36: #{tpu_custom_call.1} parent=0 // pred_region
    _
  $region37: #{tpu_custom_call.1} parent=0 // pred_fallthru
    _

</llo_original>
